<compile_context>
chip_gen: v7x
topology: tpu7x:2x2x1
jax: 0.10.0
libtpu: 0.0.40
codegen_flags: <defaults>
</compile_context>

<pallas_src>
import functools

import jax
import jax.numpy as jnp
from jax.experimental import pallas as pl
from jax.experimental.pallas import tpu as pltpu


def _deepjet_5to4_kernel(x_ref, o_ref, *, i_b, i_c, i_cvl, i_qg, prefix,
                         approx_recip):
    """Natural layout: x_ref (TB, feat), o_ref (TB, prefix + 4).

    Batch rows sit on sublanes, features on lanes.  The block is loaded once,
    the analytic columns are computed in f32, and the whole output block is
    assembled in registers and stored with a single vst per (8,128) tile.
    """
    x = x_ref[...]                        # one load of the whole block
    tb, feat = x.shape
    out_feat = o_ref.shape[-1]

    # Per-row math in f32 (v5e has no bf16 VPU/EUP).
    C = x[:, i_c:i_c + 1].astype(jnp.float32)
    CvL = x[:, i_cvl:i_cvl + 1].astype(jnp.float32)
    QG = x[:, i_qg:i_qg + 1].astype(jnp.float32)

    if approx_recip:
        # Opt-in EUP approximate reciprocal.  Off by default: the kernel is
        # HBM-bound, so the exact divide is free and more accurate.
        t = C * pl.reciprocal(CvL, approx=True) - C
    else:
        t = C / CvL - C                   # C/CvL - C
    col_light = ((1.0 - QG) * t).astype(o_ref.dtype)   # (1-QG)*(C/CvL - C)
    col_gluon = (QG * t).astype(o_ref.dtype)           # QG*(C/CvL - C)

    lane = jax.lax.broadcasted_iota(jnp.int32, (tb, out_feat), 1)
    if i_c == i_b + 1 and out_feat <= feat:
        # Common DeepJet layout: indices are contiguous, so output lanes
        # [0, prefix+2) are exactly input lanes [0, prefix+2); only the two
        # analytic columns need to be spliced in.
        out = x[:, :out_feat]
    else:
        # General index positions: splice every output column by lane index.
        out = jnp.zeros((tb, out_feat), o_ref.dtype)
        for j in range(prefix):                                   # passthrough
            out = jnp.where(lane == j, x[:, j:j + 1], out)
        out = jnp.where(lane == prefix, x[:, i_b:i_b + 1], out)      # B
        out = jnp.where(lane == prefix + 1, x[:, i_c:i_c + 1], out)  # C
    out = jnp.where(lane == prefix + 2, col_light, out)
    out = jnp.where(lane == prefix + 3, col_gluon, out)

    # Single fused store of the whole block.
    o_ref[...] = out.astype(o_ref.dtype)


def _choose_block_rows(batch, bytes_per_row, *, vmem_budget_bytes=10 << 20,
                       target_steps=4, min_rows=1024):
    """Pick the batch-tile height.

    Budget = double-buffered (input + output) tile <= ~10 MiB, which fits the
    default scoped-VMEM limit on every generation (v5e 16 MiB, v6e/v7x 32 MiB)
    and v7x's 64 MiB physical VMEM without vmem_limit_bytes overrides.  Large
    batches are split into >= `target_steps` grid steps so v7x's two
    TensorCores both get work and the DMA pipeline has something to overlap.
    """
    rows = vmem_budget_bytes // max(2 * bytes_per_row, 1)
    rows = max(rows, 8)
    rows = min(rows, max(min_rows, -(-batch // target_steps)))
    rows = (rows // 8) * 8                # sublane granularity
    if rows <= 0 or rows >= batch:
        return batch                      # single block == full array
    return rows


def deepjet_transform_5to4(x, deepjetindices, *, block_rows=None,
                           approx_recip=False):
    """Pallas port of DeepJetTransform5to4.forward.  x is (batch, feat)."""
    assert x.ndim == 2
    assert len(deepjetindices) >= 5, "need 5 indices (B, C, CvB, CvL, QG)"
    batch, feat = x.shape
    i_b, i_c, _i_cvb, i_cvl, i_qg = (int(i) for i in deepjetindices[:5])
    assert max(i_b, i_c, i_cvl, i_qg) < feat
    prefix = i_b if i_b > 0 else 0
    out_feat = prefix + 4

    itemsize = jnp.dtype(x.dtype).itemsize
    bytes_per_row = (feat + out_feat) * itemsize

    if block_rows is None:
        tb = _choose_block_rows(batch, bytes_per_row)
    else:
        tb = max(8, (int(block_rows) // 8) * 8)
        if tb >= batch:
            tb = batch
    grid = -(-batch // tb)                # cdiv; ragged tail masked by Pallas

    kernel = functools.partial(
        _deepjet_5to4_kernel,
        i_b=i_b, i_c=i_c, i_cvl=i_cvl, i_qg=i_qg,
        prefix=prefix, approx_recip=approx_recip)

    cost = pl.CostEstimate(
        flops=5 * batch,                          # div, sub, 1-QG, 2 muls
        transcendentals=batch,                    # reciprocal per row
        bytes_accessed=batch * bytes_per_row)

    return pl.pallas_call(
        kernel,
        out_shape=jax.ShapeDtypeStruct((batch, out_feat), x.dtype),
        grid=(grid,),
        in_specs=[pl.BlockSpec((tb, feat), lambda i: (i, 0))],
        out_specs=pl.BlockSpec((tb, out_feat), lambda i: (i, 0)),
        compiler_params=pltpu.CompilerParams(
            dimension_semantics=("parallel",)),
        cost_estimate=cost,
    )(x)


def _reference(x, deepjetindices):
    """Pure-JAX mirror of the PyTorch forward, for verification."""
    i_b, i_c, _, i_cvl, i_qg = (int(i) for i in deepjetindices[:5])
    B = x[:, i_b:i_b + 1]
    C = x[:, i_c:i_c + 1]
    CvL = x[:, i_cvl:i_cvl + 1]
    QG = x[:, i_qg:i_qg + 1]
    t = C / CvL - C
    analytical = jnp.concatenate([B, C, (1.0 - QG) * t, QG * t], axis=1)
    if i_b > 0:
        return jnp.concatenate([x[:, :i_b], analytical], axis=1)
    return analytical


if __name__ == "__main__":
    feat = 12
    key = jax.random.PRNGKey(0)
    x = jax.random.uniform(key, (64, feat), dtype=jnp.float32,
                           minval=0.1, maxval=0.9)

    # (1) Standard DeepJet config: 4 passthrough columns, scores at 4..8.
    dj = [4, 5, 6, 7, 8]
    out = jax.block_until_ready(deepjet_transform_5to4(x, dj))
    ref = _reference(x, dj)
    assert out.shape == ref.shape, (out.shape, ref.shape)
    assert jnp.allclose(out, ref, rtol=1e-5, atol=1e-5)

    # (2) No-prefix configuration (deepjetindices[0] == 0).
    dj0 = [0, 1, 2, 3, 4]
    out0 = jax.block_until_ready(deepjet_transform_5to4(x, dj0))
    assert jnp.allclose(out0, _reference(x, dj0), rtol=1e-5, atol=1e-5)

    # (3) Ragged batch + multi-step grid (exercises the masked tail block).
    xb = jax.random.uniform(jax.random.PRNGKey(1), (37, feat),
                            dtype=jnp.float32, minval=0.1, maxval=0.9)
    outb = jax.block_until_ready(
        deepjet_transform_5to4(xb, dj, block_rows=16))
    assert jnp.allclose(outb, _reference(xb, dj), rtol=1e-5, atol=1e-5)

    # (4) Non-contiguous indices -> general lane-assembly path, tiny batch.
    djn = [3, 5, 7, 9, 11]
    xs = jax.random.uniform(jax.random.PRNGKey(2), (2, feat),
                            dtype=jnp.float32, minval=0.1, maxval=0.9)
    outn = jax.block_until_ready(deepjet_transform_5to4(xs, djn))
    assert jnp.allclose(outn, _reference(xs, djn), rtol=1e-5, atol=1e-5)

    # (5) Opt-in EUP approximate reciprocal (relaxed tolerance on purpose).
    outa = jax.block_until_ready(
        deepjet_transform_5to4(x, dj, approx_recip=True))
    assert jnp.allclose(outa, ref, rtol=1e-2, atol=1e-2)

    print("KERNEL_OK")
</pallas_src>

<mosaic_0001>
module attributes {stable_mosaic.version = 11 : i64} {
  func.func @_deepjet_5to4_kernel(%arg0: i32, %arg1: memref<64x12xf32, #tpu.memory_space<vmem>>, %arg2: memref<64x8xf32, #tpu.memory_space<vmem>>) attributes {dimension_semantics = [#tpu.dimension_semantics<parallel>], iteration_bounds = array<i64: 1>, scalar_prefetch = 0 : i64, scratch_operands = 0 : i64, tpu.core_type = #tpu.core_type<tc>, window_params = [{transform_indices = @transform_0, window_bounds = array<i64: 64, 12>}, {transform_indices = @transform_1, window_bounds = array<i64: 64, 8>}]} {
    %c0 = arith.constant 0 : index
    %c0_0 = arith.constant 0 : index
    %0 = vector.load %arg1[%c0, %c0_0] : memref<64x12xf32, #tpu.memory_space<vmem>>, vector<64x12xf32>
    %1 = vector.extract_strided_slice %0 {offsets = [0, 5], sizes = [64, 1], strides = [1, 1]} : vector<64x12xf32> to vector<64x1xf32>
    %2 = vector.extract_strided_slice %0 {offsets = [0, 7], sizes = [64, 1], strides = [1, 1]} : vector<64x12xf32> to vector<64x1xf32>
    %3 = vector.extract_strided_slice %0 {offsets = [0, 8], sizes = [64, 1], strides = [1, 1]} : vector<64x12xf32> to vector<64x1xf32>
    %4 = arith.divf %1, %2 : vector<64x1xf32>
    %5 = arith.subf %4, %1 : vector<64x1xf32>
    %cst = arith.constant 1.000000e+00 : f32
    %6 = vector.broadcast %cst : f32 to vector<64x1xf32>
    %7 = arith.subf %6, %3 : vector<64x1xf32>
    %8 = arith.mulf %7, %5 : vector<64x1xf32>
    %9 = arith.mulf %3, %5 : vector<64x1xf32>
    %10 = tpu.iota {dimensions = array<i32: 1>} : vector<64x8xi32>
    %11 = vector.extract_strided_slice %0 {offsets = [0, 0], sizes = [64, 8], strides = [1, 1]} : vector<64x12xf32> to vector<64x8xf32>
    %c6_i32 = arith.constant 6 : i32
    %12 = vector.broadcast %c6_i32 : i32 to vector<64x8xi32>
    %13 = arith.cmpi eq, %10, %12 : vector<64x8xi32>
    %14 = vector.shape_cast %8 : vector<64x1xf32> to vector<64x1xf32>
    %15 = vector.broadcast %14 : vector<64x1xf32> to vector<64x8xf32>
    %16 = arith.select %13, %15, %11 : vector<64x8xi1>, vector<64x8xf32>
    %c7_i32 = arith.constant 7 : i32
    %17 = vector.broadcast %c7_i32 : i32 to vector<64x8xi32>
    %18 = arith.cmpi eq, %10, %17 : vector<64x8xi32>
    %19 = vector.shape_cast %9 : vector<64x1xf32> to vector<64x1xf32>
    %20 = vector.broadcast %19 : vector<64x1xf32> to vector<64x8xf32>
    %21 = arith.select %18, %20, %16 : vector<64x8xi1>, vector<64x8xf32>
    %c0_1 = arith.constant 0 : index
    %c0_2 = arith.constant 0 : index
    %22 = vector.load %arg2[%c0_1, %c0_2] : memref<64x8xf32, #tpu.memory_space<vmem>>, vector<64x8xf32>
    tpu.vector_store %arg2[%c0_1, %c0_2], %21 {strides = array<i32>} : memref<64x8xf32, #tpu.memory_space<vmem>>, vector<64x8xf32>,
    return
  }
  func.func @transform_0(%arg0: i32) -> (i32, i32) {
    %c0_i32 = arith.constant 0 : i32
    %c0_i32_0 = arith.constant 0 : i32
    return %arg0, %c0_i32 : i32, i32
  }
  func.func @transform_1(%arg0: i32) -> (i32, i32) {
    %c0_i32 = arith.constant 0 : i32
    %c0_i32_0 = arith.constant 0 : i32
    return %arg0, %c0_i32 : i32, i32
  }
}

</mosaic_0001>

<llo_original>
// kernel: tpu_custom_call.1
$region0: #{tpu_custom_call.1}
  #allocation0 [shape = 'u32[]', space=smem, size = 0x4, offset = 0x4, fixed_abs, tag = 'smem constant byte address 0x4 - core index']
  #allocation1 [shape = 'u32[144,128]{1,0:T(1,128)}', space=vmem, size = 0x12000, scoped, tag = 'internal scratch']
  %s0 = inlined_call_operand.vmem [shape: f32[64,12], index: 0, kind: input, shape index: {}]
  %s1 = inlined_call_operand.vmem [shape: f32[64,8], index: 1, kind: output, shape index: {}]
  %s2 = sld [smem:[#allocation0]]
  $region14: #{tpu_custom_call.1} parent=0
    _
  %s4 = ssub.s32 1, %s2
  %s5 = scalar_select 0, %s4, %s2
  // Predicated region
  $region2: #{tpu_custom_call.1} parent=0 // pred_check
    _
  $region3: #{tpu_custom_call.1} parent=0 // pred_check_branch
    %7 = sbr.rel (0) target = $region5
  $region4: #{tpu_custom_call.1} parent=0 // pred_region
    _
  $region5: #{tpu_custom_call.1} parent=0 // pred_fallthru
    _
  %v8 = vld [vmem:[%s0] sm:$0xff]
  %v9 = vld [vmem:[%s0 + $0x8] sm:$0xff]
  %v10 = vld [vmem:[%s0 + $0x10] sm:$0xff]
  %v11 = vld [vmem:[%s0 + $0x18] sm:$0xff]
  %v12 = vld [vmem:[%s0 + $0x20] sm:$0xff]
  %v13 = vld [vmem:[%s0 + $0x28] sm:$0xff]
  %v14 = vld [vmem:[%s0 + $0x30] sm:$0xff]
  %v15 = vld [vmem:[%s0 + $0x38] sm:$0xff]
  %24 = vrot.lane.b32.xlu0 %v8, 126
  %v25 = vpop.permute.xlu0 %24
  %26 = vrot.lane.b32.xlu0 %v9, 126
  %v27 = vpop.permute.xlu0 %26
  %28 = vrot.lane.b32.xlu0 %v10, 126
  %v29 = vpop.permute.xlu0 %28
  %30 = vrot.lane.b32.xlu0 %v11, 126
  %v31 = vpop.permute.xlu0 %30
  %32 = vrot.lane.b32.xlu0 %v12, 126
  %v33 = vpop.permute.xlu0 %32
  %34 = vrot.lane.b32.xlu0 %v13, 126
  %v35 = vpop.permute.xlu0 %34
  %36 = vrot.lane.b32.xlu0 %v14, 126
  %v37 = vpop.permute.xlu0 %36
  %38 = vrot.lane.b32.xlu0 %v15, 126
  %v39 = vpop.permute.xlu0 %38
  %v48 = vrcp.pop %v25
  %v49 = vmul.f32 %v8, %v48
  %v50 = vrcp.pop %v27
  %v51 = vmul.f32 %v9, %v50
  %v52 = vrcp.pop %v29
  %v53 = vmul.f32 %v10, %v52
  %v54 = vrcp.pop %v31
  %v55 = vmul.f32 %v11, %v54
  %v56 = vrcp.pop %v33
  %v57 = vmul.f32 %v12, %v56
  %v58 = vrcp.pop %v35
  %v59 = vmul.f32 %v13, %v58
  %v60 = vrcp.pop %v37
  %v61 = vmul.f32 %v14, %v60
  %v62 = vrcp.pop %v39
  %v63 = vmul.f32 %v15, %v62
  %v64 = vsub.f32 %v49, %v8
  %v65 = vsub.f32 %v51, %v9
  %v66 = vsub.f32 %v53, %v10
  %v67 = vsub.f32 %v55, %v11
  %v68 = vsub.f32 %v57, %v12
  %v69 = vsub.f32 %v59, %v13
  %v70 = vsub.f32 %v61, %v14
  %v71 = vsub.f32 %v63, %v15
  %v72 = vsub.f32 1.0, %v8
  %v73 = vsub.f32 1.0, %v9
  %v74 = vsub.f32 1.0, %v10
  %v75 = vsub.f32 1.0, %v11
  %v76 = vsub.f32 1.0, %v12
  %v77 = vsub.f32 1.0, %v13
  %v78 = vsub.f32 1.0, %v14
  %v79 = vsub.f32 1.0, %v15
  %88 = vrot.lane.b32.xlu0 %v64, 3
  %v89 = vpop.permute.xlu0 %88
  %90 = vrot.lane.b32.xlu0 %v65, 3
  %v91 = vpop.permute.xlu0 %90
  %92 = vrot.lane.b32.xlu0 %v66, 3
  %v93 = vpop.permute.xlu0 %92
  %94 = vrot.lane.b32.xlu0 %v67, 3
  %v95 = vpop.permute.xlu0 %94
  %96 = vrot.lane.b32.xlu0 %v68, 3
  %v97 = vpop.permute.xlu0 %96
  %98 = vrot.lane.b32.xlu0 %v69, 3
  %v99 = vpop.permute.xlu0 %98
  %100 = vrot.lane.b32.xlu0 %v70, 3
  %v101 = vpop.permute.xlu0 %100
  %102 = vrot.lane.b32.xlu0 %v71, 3
  %v103 = vpop.permute.xlu0 %102
  %v112 = vmul.f32 %v72, %v89
  %v113 = vmul.f32 %v73, %v91
  %v114 = vmul.f32 %v74, %v93
  %v115 = vmul.f32 %v75, %v95
  %v116 = vmul.f32 %v76, %v97
  %v117 = vmul.f32 %v77, %v99
  %v118 = vmul.f32 %v78, %v101
  %v119 = vmul.f32 %v79, %v103
  %v120 = vmul.f32 %v8, %v89
  %v121 = vmul.f32 %v9, %v91
  %v122 = vmul.f32 %v10, %v93
  %v123 = vmul.f32 %v11, %v95
  %v124 = vmul.f32 %v12, %v97
  %v125 = vmul.f32 %v13, %v99
  %v126 = vmul.f32 %v14, %v101
  %v127 = vmul.f32 %v15, %v103
  %v128 = vlaneseq
  %v129 = vand.u32 %v128, 127
  %vm130 = vcmp.eq.s32.totalorder %v129, 6
  %132 = vset.pattern.permute.xlu0 8
  %133 = vperm.xlu0 %132, %v112
  %v134 = vpop.permute.xlu0 %133
  %137 = vset.pattern.permute.xlu0 8
  %138 = vperm.xlu0 %137, %v113
  %v139 = vpop.permute.xlu0 %138
  %142 = vset.pattern.permute.xlu0 8
  %143 = vperm.xlu0 %142, %v114
  %v144 = vpop.permute.xlu0 %143
  %147 = vset.pattern.permute.xlu0 8
  %148 = vperm.xlu0 %147, %v115
  %v149 = vpop.permute.xlu0 %148
  %152 = vset.pattern.permute.xlu0 8
  %153 = vperm.xlu0 %152, %v116
  %v154 = vpop.permute.xlu0 %153
  %157 = vset.pattern.permute.xlu0 8
  %158 = vperm.xlu0 %157, %v117
  %v159 = vpop.permute.xlu0 %158
  %162 = vset.pattern.permute.xlu0 8
  %163 = vperm.xlu0 %162, %v118
  %v164 = vpop.permute.xlu0 %163
  %167 = vset.pattern.permute.xlu0 8
  %168 = vperm.xlu0 %167, %v119
  %v169 = vpop.permute.xlu0 %168
  %v171 = vsel %vm130, %v134, %v8
  %v172 = vsel %vm130, %v139, %v9
  %v173 = vsel %vm130, %v144, %v10
  %v174 = vsel %vm130, %v149, %v11
  %v175 = vsel %vm130, %v154, %v12
  %v176 = vsel %vm130, %v159, %v13
  %v177 = vsel %vm130, %v164, %v14
  %v178 = vsel %vm130, %v169, %v15
  %vm179 = vcmp.eq.s32.totalorder %v129, 7
  %181 = vset.pattern.permute.xlu0 8
  %182 = vperm.xlu0 %181, %v120
  %v183 = vpop.permute.xlu0 %182
  %186 = vset.pattern.permute.xlu0 8
  %187 = vperm.xlu0 %186, %v121
  %v188 = vpop.permute.xlu0 %187
  %191 = vset.pattern.permute.xlu0 8
  %192 = vperm.xlu0 %191, %v122
  %v193 = vpop.permute.xlu0 %192
  %196 = vset.pattern.permute.xlu0 8
  %197 = vperm.xlu0 %196, %v123
  %v198 = vpop.permute.xlu0 %197
  %201 = vset.pattern.permute.xlu0 8
  %202 = vperm.xlu0 %201, %v124
  %v203 = vpop.permute.xlu0 %202
  %206 = vset.pattern.permute.xlu0 8
  %207 = vperm.xlu0 %206, %v125
  %v208 = vpop.permute.xlu0 %207
  %211 = vset.pattern.permute.xlu0 8
  %212 = vperm.xlu0 %211, %v126
  %v213 = vpop.permute.xlu0 %212
  %216 = vset.pattern.permute.xlu0 8
  %217 = vperm.xlu0 %216, %v127
  %v218 = vpop.permute.xlu0 %217
  %v220 = vsel %vm179, %v183, %v171
  %v221 = vsel %vm179, %v188, %v172
  %v222 = vsel %vm179, %v193, %v173
  %v223 = vsel %vm179, %v198, %v174
  %v224 = vsel %vm179, %v203, %v175
  %v225 = vsel %vm179, %v208, %v176
  %v226 = vsel %vm179, %v213, %v177
  %v227 = vsel %vm179, %v218, %v178
  %vm228 = vcmask 64512
  %229 = vst.msk [vmem:[%s1] sm:$0xff] %vm228, %v220
  %230 = vst.msk [vmem:[%s1 + $0x8] sm:$0xff] %vm228, %v221
  %231 = vst.msk [vmem:[%s1 + $0x10] sm:$0xff] %vm228, %v222
  %232 = vst.msk [vmem:[%s1 + $0x18] sm:$0xff] %vm228, %v223
  %233 = vst.msk [vmem:[%s1 + $0x20] sm:$0xff] %vm228, %v224
  %234 = vst.msk [vmem:[%s1 + $0x28] sm:$0xff] %vm228, %v225
  %235 = vst.msk [vmem:[%s1 + $0x30] sm:$0xff] %vm228, %v226
  %236 = vst.msk [vmem:[%s1 + $0x38] sm:$0xff] %vm228, %v227
  // Predicated region
  $region6: #{tpu_custom_call.1} parent=0 // pred_check
    _
  $region7: #{tpu_custom_call.1} parent=0 // pred_check_branch
    %238 = sbr.rel (0) target = $region9
  $region8: #{tpu_custom_call.1} parent=0 // pred_region
    _
  $region9: #{tpu_custom_call.1} parent=0 // pred_fallthru
    _
  // Predicated region
  $region10: #{tpu_custom_call.1} parent=0 // pred_check
    _
  $region11: #{tpu_custom_call.1} parent=0 // pred_check_branch
    %240 = sbr.rel (0) target = $region13
  $region12: #{tpu_custom_call.1} parent=0 // pred_region
    _
  $region13: #{tpu_custom_call.1} parent=0 // pred_fallthru
    _

</llo_original>
